<compile_context>
chip_gen: v5e
topology: v5e:2x2
jax: 0.10.0
libtpu: 0.0.40
codegen_flags: <defaults>
</compile_context>

<pallas_src>
import math

import jax
import jax.numpy as jnp
import numpy as np
from jax.experimental import pallas as pl
from jax.experimental.pallas import tpu as pltpu


# ----------------------------- Pallas kernel ---------------------------------


def _silu(x):
    return x * jax.nn.sigmoid(x)


def qc_x_kernel(feat_ref, w_emb_ref, w_slab_ref, b_slab_ref, out_ref):
    # w_slab layout (columns): [ Wq | Wk | Wv | W_cls1 | W_cls2 (zero-padded to D) ]
    # b_slab layout (rows):    [ b_emb ; b_cls1 ; b_cls2 (zero-padded to D) ]
    D = w_emb_ref.shape[1]
    nc = out_ref.shape[-1]

    feat = feat_ref[0]                                          # (S, F)

    # ----- Encoder embed: SiLU(feat @ W_emb + b_emb) -----
    x = jnp.dot(feat, w_emb_ref[...], preferred_element_type=jnp.float32)
    x = _silu(x + b_slab_ref[0:1, :])                           # (S, D)

    # ----- fused Q/K/V projection: one (S,D)@(D,3D) MXU push -----
    qkv = jnp.dot(x, w_slab_ref[:, 0:3 * D],
                  preferred_element_type=jnp.float32)           # (S, 3D)
    q = qkv[:, 0:D]
    k = qkv[:, D:2 * D]
    v = qkv[:, 2 * D:3 * D]

    # ----- attention scores (contract last dims; no explicit transpose) -----
    scores = jax.lax.dot_general(
        q, k, (((1,), (1,)), ((), ())),
        preferred_element_type=jnp.float32) * (1.0 / math.sqrt(D))   # (S, S)

    # manual softmax (exact reciprocal to preserve 1e-5 parity with reference)
    m = jnp.max(scores, axis=-1, keepdims=True)
    p = jnp.exp(scores - m)
    l = jnp.sum(p, axis=-1, keepdims=True)
    ctx = jnp.dot(p, v, preferred_element_type=jnp.float32) * (1.0 / l)
    z = x + ctx                                                 # (S, D) residual

    # ----- ClassificationHead: mean-pool over S, then MLP -> logits -----
    # TODO(synk): ClassificationHead source not provided; synthesized as
    # mean-pool + Linear->SiLU->Linear (logits, no softmax).
    pooled = jnp.mean(z, axis=0, keepdims=True)                 # (1, D)
    h = jnp.dot(pooled, w_slab_ref[:, 3 * D:4 * D],
                preferred_element_type=jnp.float32) + b_slab_ref[1:2, :]
    h = _silu(h)
    logits = jnp.dot(h, w_slab_ref[:, 4 * D:5 * D],
                     preferred_element_type=jnp.float32) + b_slab_ref[2:3, :]

    out_ref[0] = logits[:, 0:nc]                                # (1, nc)


# ------------------------------ wrapper ---------------------------------------


def pack_params(params):
    """Consolidate all weights into 3 arrays: w_emb, (D,5D) weight slab, (3,D) bias slab."""
    D = params["w_emb"].shape[1]
    nc = params["w_cls2"].shape[1]
    pad = D - nc
    w_slab = jnp.concatenate(
        [params["wq"], params["wk"], params["wv"], params["w_cls1"],
         jnp.pad(params["w_cls2"], ((0, 0), (0, pad)))], axis=1)     # (D, 5D)
    b_slab = jnp.stack(
        [params["b_emb"], params["b_cls1"],
         jnp.pad(params["b_cls2"], (0, pad))], axis=0)               # (3, D)
    return params["w_emb"], w_slab, b_slab


def qc_x_forward(kps, bbox, w_emb, w_slab, b_slab, n_clusters):
    """Runs the Qc_x forward pass with the Pallas kernel. Returns c_logits (B, n_clusters)."""
    # TODO(synk): `is_train` only gates dropout inside the (unavailable) Encoder
    # source; eval semantics (no dropout) are implemented.
    B, S, _ = kps.shape
    feat = jnp.concatenate([kps, bbox], axis=-1)                 # (B, S, Dk+4)
    F = feat.shape[-1]
    D = w_emb.shape[1]

    out = pl.pallas_call(
        qc_x_kernel,
        grid=(B,),
        in_specs=[
            pl.BlockSpec((1, S, F), lambda b: (b, 0, 0)),        # per-batch features
            pl.BlockSpec((F, D), lambda b: (0, 0)),              # w_emb (resident)
            pl.BlockSpec((D, 5 * D), lambda b: (0, 0)),          # packed weight slab
            pl.BlockSpec((3, D), lambda b: (0, 0)),              # packed bias slab
        ],
        out_specs=pl.BlockSpec((1, 1, n_clusters), lambda b: (b, 0, 0)),
        out_shape=jax.ShapeDtypeStruct((B, 1, n_clusters), jnp.float32),
        compiler_params=pltpu.CompilerParams(
            dimension_semantics=("parallel",)),
    )(feat, w_emb, w_slab, b_slab)
    return out[:, 0, :]


# ------------------------- pure-JAX reference ---------------------------------


def qc_x_reference(kps, bbox, params):
    feat = jnp.concatenate([kps, bbox], axis=-1)
    x = _silu(feat @ params["w_emb"] + params["b_emb"])
    q = x @ params["wq"]
    k = x @ params["wk"]
    v = x @ params["wv"]
    d = x.shape[-1]
    attn = jax.nn.softmax(jnp.einsum("bsd,btd->bst", q, k) / math.sqrt(d), axis=-1)
    z = x + jnp.einsum("bst,btd->bsd", attn, v)

    pooled = z.mean(axis=1)                                      # (B, D)
    h = _silu(pooled @ params["w_cls1"] + params["b_cls1"])
    return h @ params["w_cls2"] + params["b_cls2"]               # (B, n_clusters)


# ------------------------------- main ------------------------------------------


def init_params(key, feat_dim, hidden_ndim, n_clusters):
    D = hidden_ndim
    shapes = {
        "w_emb": (feat_dim, D), "b_emb": (D,),
        "wq": (D, D), "wk": (D, D), "wv": (D, D),
        "w_cls1": (D, D), "b_cls1": (D,),
        "w_cls2": (D, n_clusters), "b_cls2": (n_clusters,),
    }
    params = {}
    keys = jax.random.split(key, len(shapes))
    for k_, (name, shp) in zip(keys, sorted(shapes.items())):
        params[name] = (0.1 * jax.random.normal(k_, shp)).astype(jnp.float32)
    return params


if __name__ == "__main__":
    B, S = 2, 8                 # batch, sequence length
    n_kps = 17                  # keypoints per frame -> 34 coords
    kps_dim = n_kps * 2
    bbox_dim = 4
    hidden_ndim = 32
    n_clusters = 4

    root = jax.random.PRNGKey(0)
    k_kps, k_bbox, k_par = jax.random.split(root, 3)

    kps = jax.random.normal(k_kps, (B, S, kps_dim), dtype=jnp.float32)
    bbox = jax.random.normal(k_bbox, (B, S, bbox_dim), dtype=jnp.float32)

    params = init_params(k_par, kps_dim + bbox_dim, hidden_ndim, n_clusters)
    w_emb, w_slab, b_slab = pack_params(params)      # packed once, outside the hot path

    c_logits = qc_x_forward(kps, bbox, w_emb, w_slab, b_slab, n_clusters)
    jax.block_until_ready(c_logits)

    c_ref = qc_x_reference(kps, bbox, params)
    np.testing.assert_allclose(np.asarray(c_logits), np.asarray(c_ref),
                               rtol=1e-5, atol=1e-5)

    print("KERNEL_OK")
</pallas_src>

<mosaic_0001>
module attributes {stable_mosaic.version = 11 : i64} {
  func.func @qc_x_kernel(%arg0: i32, %arg1: memref<1x8x38xf32, #tpu.memory_space<vmem>>, %arg2: memref<38x32xf32, #tpu.memory_space<vmem>>, %arg3: memref<32x160xf32, #tpu.memory_space<vmem>>, %arg4: memref<3x32xf32, #tpu.memory_space<vmem>>, %arg5: memref<1x1x4xf32, #tpu.memory_space<vmem>>) attributes {dimension_semantics = [#tpu.dimension_semantics<parallel>], iteration_bounds = array<i64: 2>, scalar_prefetch = 0 : i64, scratch_operands = 0 : i64, tpu.core_type = #tpu.core_type<tc>, window_params = [{transform_indices = @transform_0, window_bounds = array<i64: 1, 8, 38>}, {pipeline_mode = #tpu.pipeline_mode<synchronous>, transform_indices = @transform_1, window_bounds = array<i64: 38, 32>}, {pipeline_mode = #tpu.pipeline_mode<synchronous>, transform_indices = @transform_2, window_bounds = array<i64: 32, 160>}, {pipeline_mode = #tpu.pipeline_mode<synchronous>, transform_indices = @transform_3, window_bounds = array<i64: 3, 32>}, {transform_indices = @transform_4, window_bounds = array<i64: 1, 1, 4>}]} {
    %c0 = arith.constant 0 : index
    %c0_0 = arith.constant 0 : index
    %c0_1 = arith.constant 0 : index
    %0 = vector.load %arg1[%c0, %c0_0, %c0_1] : memref<1x8x38xf32, #tpu.memory_space<vmem>>, vector<1x8x38xf32>
    %1 = vector.shape_cast %0 : vector<1x8x38xf32> to vector<8x38xf32>
    %c0_2 = arith.constant 0 : index
    %c0_3 = arith.constant 0 : index
    %2 = vector.load %arg2[%c0_2, %c0_3] : memref<38x32xf32, #tpu.memory_space<vmem>>, vector<38x32xf32>
    %cst = arith.constant dense<0.000000e+00> : vector<8x32xf32>
    %3 = tpu.matmul %1, %2, %cst {dimension_numbers = #tpu.dot_dimension_numbers<[1], [0], [0], [1], [0, 0, 1, 1], [], []>} : vector<8x38xf32>, vector<38x32xf32>, vector<8x32xf32> -> vector<8x32xf32>
    %c0_4 = arith.constant 0 : index
    %c0_5 = arith.constant 0 : index
    %4 = vector.load %arg4[%c0_4, %c0_5] : memref<3x32xf32, #tpu.memory_space<vmem>>, vector<1x32xf32>
    %5 = vector.broadcast %4 : vector<1x32xf32> to vector<8x32xf32>
    %6 = arith.addf %3, %5 : vector<8x32xf32>
    %7 = arith.negf %6 : vector<8x32xf32>
    %8 = math.exp %7 : vector<8x32xf32>
    %cst_6 = arith.constant 1.000000e+00 : f32
    %9 = vector.broadcast %cst_6 : f32 to vector<8x32xf32>
    %10 = arith.addf %9, %8 : vector<8x32xf32>
    %11 = arith.divf %9, %10 : vector<8x32xf32>
    %12 = arith.mulf %6, %11 : vector<8x32xf32>
    %c0_7 = arith.constant 0 : index
    %c0_8 = arith.constant 0 : index
    %13 = vector.load %arg3[%c0_7, %c0_8] : memref<32x160xf32, #tpu.memory_space<vmem>>, vector<32x96xf32>
    %cst_9 = arith.constant dense<0.000000e+00> : vector<8x96xf32>
    %14 = tpu.matmul %12, %13, %cst_9 {dimension_numbers = #tpu.dot_dimension_numbers<[1], [0], [0], [1], [0, 0, 1, 1], [], []>} : vector<8x32xf32>, vector<32x96xf32>, vector<8x96xf32> -> vector<8x96xf32>
    %15 = vector.extract_strided_slice %14 {offsets = [0, 0], sizes = [8, 32], strides = [1, 1]} : vector<8x96xf32> to vector<8x32xf32>
    %16 = vector.extract_strided_slice %14 {offsets = [0, 32], sizes = [8, 32], strides = [1, 1]} : vector<8x96xf32> to vector<8x32xf32>
    %17 = vector.extract_strided_slice %14 {offsets = [0, 64], sizes = [8, 32], strides = [1, 1]} : vector<8x96xf32> to vector<8x32xf32>
    %cst_10 = arith.constant dense<0.000000e+00> : vector<8x8xf32>
    %18 = tpu.matmul %15, %16, %cst_10 {dimension_numbers = #tpu.dot_dimension_numbers<[1], [1], [0], [0], [0, 0, 1, 0], [], []>} : vector<8x32xf32>, vector<8x32xf32>, vector<8x8xf32> -> vector<8x8xf32>
    %cst_11 = arith.constant 0.176776692 : f32
    %19 = vector.broadcast %cst_11 : f32 to vector<8x8xf32>
    %20 = arith.mulf %18, %19 : vector<8x8xf32>
    %cst_12 = arith.constant dense<0xFF800000> : vector<8xf32>
    %21 = vector.multi_reduction <maximumf>, %20, %cst_12 [1] : vector<8x8xf32> to vector<8xf32>
    %22 = vector.shape_cast %21 : vector<8xf32> to vector<8x1xf32>
    %23 = vector.broadcast %22 : vector<8x1xf32> to vector<8x8xf32>
    %24 = arith.subf %20, %23 : vector<8x8xf32>
    %25 = math.exp %24 : vector<8x8xf32>
    %cst_13 = arith.constant dense<0.000000e+00> : vector<8xf32>
    %26 = vector.multi_reduction <add>, %25, %cst_13 [1] : vector<8x8xf32> to vector<8xf32>
    %27 = vector.shape_cast %26 : vector<8xf32> to vector<8x1xf32>
    %cst_14 = arith.constant dense<0.000000e+00> : vector<8x32xf32>
    %28 = tpu.matmul %25, %17, %cst_14 {dimension_numbers = #tpu.dot_dimension_numbers<[1], [0], [0], [1], [0, 0, 1, 1], [], []>} : vector<8x8xf32>, vector<8x32xf32>, vector<8x32xf32> -> vector<8x32xf32>
    %cst_15 = arith.constant 1.000000e+00 : f32
    %29 = vector.broadcast %cst_15 : f32 to vector<8x1xf32>
    %30 = arith.divf %29, %27 : vector<8x1xf32>
    %31 = vector.broadcast %30 : vector<8x1xf32> to vector<8x32xf32>
    %32 = arith.mulf %28, %31 : vector<8x32xf32>
    %33 = arith.addf %12, %32 : vector<8x32xf32>
    %cst_16 = arith.constant dense<0.000000e+00> : vector<32xf32>
    %34 = vector.multi_reduction <add>, %33, %cst_16 [0] : vector<8x32xf32> to vector<32xf32>
    %35 = vector.shape_cast %34 : vector<32xf32> to vector<1x32xf32>
    %cst_17 = arith.constant 8.000000e+00 : f32
    %36 = vector.broadcast %cst_17 : f32 to vector<1x32xf32>
    %37 = arith.divf %35, %36 : vector<1x32xf32>
    %c0_18 = arith.constant 0 : index
    %c96 = arith.constant 96 : index
    %38 = vector.load %arg3[%c0_18, %c96] : memref<32x160xf32, #tpu.memory_space<vmem>>, vector<32x32xf32>
    %cst_19 = arith.constant dense<0.000000e+00> : vector<1x32xf32>
    %39 = tpu.matmul %37, %38, %cst_19 {dimension_numbers = #tpu.dot_dimension_numbers<[1], [0], [0], [1], [0, 0, 1, 1], [], []>} : vector<1x32xf32>, vector<32x32xf32>, vector<1x32xf32> -> vector<1x32xf32>
    %c1 = arith.constant 1 : index
    %c0_20 = arith.constant 0 : index
    %40 = vector.load %arg4[%c1, %c0_20] : memref<3x32xf32, #tpu.memory_space<vmem>>, vector<1x32xf32>
    %41 = arith.addf %39, %40 : vector<1x32xf32>
    %42 = arith.negf %41 : vector<1x32xf32>
    %43 = math.exp %42 : vector<1x32xf32>
    %cst_21 = arith.constant 1.000000e+00 : f32
    %44 = vector.broadcast %cst_21 : f32 to vector<1x32xf32>
    %45 = arith.addf %44, %43 : vector<1x32xf32>
    %46 = arith.divf %44, %45 : vector<1x32xf32>
    %47 = arith.mulf %41, %46 : vector<1x32xf32>
    %c0_22 = arith.constant 0 : index
    %c128 = arith.constant 128 : index
    %48 = vector.load %arg3[%c0_22, %c128] : memref<32x160xf32, #tpu.memory_space<vmem>>, vector<32x32xf32>
    %cst_23 = arith.constant dense<0.000000e+00> : vector<1x32xf32>
    %49 = tpu.matmul %47, %48, %cst_23 {dimension_numbers = #tpu.dot_dimension_numbers<[1], [0], [0], [1], [0, 0, 1, 1], [], []>} : vector<1x32xf32>, vector<32x32xf32>, vector<1x32xf32> -> vector<1x32xf32>
    %c2 = arith.constant 2 : index
    %c0_24 = arith.constant 0 : index
    %50 = vector.load %arg4[%c2, %c0_24] : memref<3x32xf32, #tpu.memory_space<vmem>>, vector<1x32xf32>
    %51 = arith.addf %49, %50 : vector<1x32xf32>
    %52 = vector.extract_strided_slice %51 {offsets = [0, 0], sizes = [1, 4], strides = [1, 1]} : vector<1x32xf32> to vector<1x4xf32>
    %c0_25 = arith.constant 0 : index
    %c0_26 = arith.constant 0 : index
    %c0_27 = arith.constant 0 : index
    %53 = vector.load %arg5[%c0_25, %c0_26, %c0_27] : memref<1x1x4xf32, #tpu.memory_space<vmem>>, vector<1x1x4xf32>
    %54 = vector.shape_cast %53 : vector<1x1x4xf32> to vector<1x4xf32>
    %55 = vector.shape_cast %52 : vector<1x4xf32> to vector<1x1x4xf32>
    tpu.vector_store %arg5[%c0_25, %c0_26, %c0_27], %55 {strides = array<i32>} : memref<1x1x4xf32, #tpu.memory_space<vmem>>, vector<1x1x4xf32>,
    return
  }
  func.func @transform_0(%arg0: i32) -> (i32, i32, i32) {
    %c0_i32 = arith.constant 0 : i32
    %c0_i32_0 = arith.constant 0 : i32
    %c0_i32_1 = arith.constant 0 : i32
    return %arg0, %c0_i32, %c0_i32_0 : i32, i32, i32
  }
  func.func @transform_1(%arg0: i32) -> (i32, i32) {
    %c0_i32 = arith.constant 0 : i32
    %c0_i32_0 = arith.constant 0 : i32
    %c0_i32_1 = arith.constant 0 : i32
    return %c0_i32, %c0_i32_0 : i32, i32
  }
  func.func @transform_2(%arg0: i32) -> (i32, i32) {
    %c0_i32 = arith.constant 0 : i32
    %c0_i32_0 = arith.constant 0 : i32
    %c0_i32_1 = arith.constant 0 : i32
    return %c0_i32, %c0_i32_0 : i32, i32
  }
  func.func @transform_3(%arg0: i32) -> (i32, i32) {
    %c0_i32 = arith.constant 0 : i32
    %c0_i32_0 = arith.constant 0 : i32
    %c0_i32_1 = arith.constant 0 : i32
    return %c0_i32, %c0_i32_0 : i32, i32
  }
  func.func @transform_4(%arg0: i32) -> (i32, i32, i32) {
    %c0_i32 = arith.constant 0 : i32
    %c0_i32_0 = arith.constant 0 : i32
    %c0_i32_1 = arith.constant 0 : i32
    return %arg0, %c0_i32, %c0_i32_0 : i32, i32, i32
  }
}

</mosaic_0001>

<llo_original>
// kernel: tpu_custom_call.1
$region0: #{tpu_custom_call.1}
  #allocation0 [shape = 'u32[]', space=smem, size = 0x4, offset = 0x4, fixed_abs, tag = 'smem constant byte address 0x4 - core index']
  #allocation1 [shape = 'u32[72,128]{1,0:T(1,128)}', space=vmem, size = 0x9000, scoped, tag = 'internal scratch']
  %s0 = inlined_call_operand.hbm [shape: f32[2,8,38], index: 0, kind: input, shape index: {}]
  %s1 = inlined_call_operand.vmem [shape: f32[38,32], index: 1, kind: input, shape index: {}]
  %s2 = inlined_call_operand.vmem [shape: f32[32,160], index: 2, kind: input, shape index: {}]
  %s3 = inlined_call_operand.vmem [shape: f32[3,32], index: 3, kind: input, shape index: {}]
  %s4 = inlined_call_operand.hbm [shape: f32[2,1,4], index: 4, kind: output, shape index: {}]
  %s5 = sld [smem:[#allocation0]]
  $region53: #{tpu_custom_call.1} parent=0
    _
  %s7 = ssub.s32 1, %s5
  %s8 = scalar_select 0, %s7, %s5
  $region1: #{tpu_custom_call.1} parent=0
    #allocation2 [shape = 'u8[8192]{0}', space=vmem, size = 0x2000, scoped, tag = 'input window, operand 0']
    #allocation3 [shape = 's32[2]{0}', space=sflag, size = 0x8, scoped, tag = 'scoped memory for tpu_custom_call.1']
    #allocation4 [shape = 's32[2]{0}', space=sflag, size = 0x8, scoped, tag = 'scoped memory for tpu_custom_call.1']
    #allocation5 [shape = 'u8[1024]{0}', space=vmem, size = 0x400, scoped, tag = 'output window, operand 0']
    %9 = vsyncpa [#allocation3], 0
    %s10 = scalar_lea.sflag [#allocation3], 1
    %11 = vsyncpa %s10, 0
    %12 = vsyncpa [#allocation4], 0
    %s13 = scalar_lea.sflag [#allocation4], 1
    %14 = vsyncpa %s13, 0
    loop: start=0, step=1, limit=4
    $region2: #{tpu_custom_call.1} parent=1 // loop_pre_header
      _
    $region3: #{tpu_custom_call.1} parent=1 // loop_header
      %s16 = sphi 0, %s20
      %p17 = scmp.ge.s32.totalorder %s16, 4
      %s26 = sphi 0, %s28
      %s29 = sphi 0, %s26
      %s30 = sphi 0, %s29
      %s46 = sphi 0, %s30
      %s50 = sphi 0, %s50
      %s52 = sphi 0, %s50
      %s53 = sphi 0, %s52
      %s67 = sphi 0, %s53
      %s71 = sphi 0, %s71
      %s73 = sphi 0, %s71
      %s74 = sphi 0, %s73
      %s88 = sphi 0, %s74
      %s92 = sphi 0, %s92
      %s94 = sphi 0, %s92
      %s95 = sphi 0, %s94
      %s109 = sphi 0, %s95
      %s115 = sphi 0, %s117
      %s118 = sphi 0, %s115
      %s119 = sphi 0, %s118
      %s135 = sphi 0, %s119
    $region4: #{tpu_custom_call.1} parent=1 // loop_header_branch
      %19 = sbr.rel (%p17) target = $region8
    $region5: #{tpu_custom_call.1} parent=1 // loop_body
      %s21 = ssub.s32 %s16, 1
      %s22 = ssub.s32 %s16, 2
      %s23 = sadd.s32 %s16, 1
      %s24 = ssub.s32 %s16, %s23
      %p25 = scmp.eq.s32.totalorder %s24, 0
      %s27 = sadd.s32 %s26, 1
      %s28 = scalar_select %p25, %s26, %s27
      %p31 = pneg %p25
      %p32 = scmp.eq.s32.totalorder %s16, 1
      %p33 = por %p31, %p32
      %p34 = scmp.ne.s32.totalorder %s26, %s29
      %p35 = scmp.eq.s32.totalorder %s16, 0
      %p36 = por %p34, %p35
      %p37 = scmp.ne.s32.totalorder %s26, %s29
      %p38 = scmp.eq.s32.totalorder %s21, 1
      %p39 = por %p37, %p38
      %p40 = scmp.ne.s32.totalorder %s29, %s30
      %p41 = scmp.eq.s32.totalorder %s21, 0
      %p42 = por %p40, %p41
      %p43 = scmp.ne.s32.totalorder %s29, %s30
      %p44 = scmp.eq.s32.totalorder %s22, 1
      %p45 = por %p43, %p44
      %p47 = scmp.ne.s32.totalorder %s30, %s46
      %p48 = scmp.eq.s32.totalorder %s22, 0
      %p49 = por %p47, %p48
      %s51 = sadd.s32 %s50, 1
      %p54 = scmp.eq.s32.totalorder %s16, 1
      %p55 = scmp.ne.s32.totalorder %s50, %s52
      %p56 = scmp.eq.s32.totalorder %s16, 0
      %p57 = por %p55, %p56
      %p58 = scmp.ne.s32.totalorder %s50, %s52
      %p59 = scmp.eq.s32.totalorder %s21, 1
      %p60 = por %p58, %p59
      %p61 = scmp.ne.s32.totalorder %s52, %s53
      %p62 = scmp.eq.s32.totalorder %s21, 0
      %p63 = por %p61, %p62
      %p64 = scmp.ne.s32.totalorder %s52, %s53
      %p65 = scmp.eq.s32.totalorder %s22, 1
      %p66 = por %p64, %p65
      %p68 = scmp.ne.s32.totalorder %s53, %s67
      %p69 = scmp.eq.s32.totalorder %s22, 0
      %p70 = por %p68, %p69
      %s72 = sadd.s32 %s71, 1
      %p75 = scmp.eq.s32.totalorder %s16, 1
      %p76 = scmp.ne.s32.totalorder %s71, %s73
      %p77 = scmp.eq.s32.totalorder %s16, 0
      %p78 = por %p76, %p77
      %p79 = scmp.ne.s32.totalorder %s71, %s73
      %p80 = scmp.eq.s32.totalorder %s21, 1
      %p81 = por %p79, %p80
      %p82 = scmp.ne.s32.totalorder %s73, %s74
      %p83 = scmp.eq.s32.totalorder %s21, 0
      %p84 = por %p82, %p83
      %p85 = scmp.ne.s32.totalorder %s73, %s74
      %p86 = scmp.eq.s32.totalorder %s22, 1
      %p87 = por %p85, %p86
      %p89 = scmp.ne.s32.totalorder %s74, %s88
      %p90 = scmp.eq.s32.totalorder %s22, 0
      %p91 = por %p89, %p90
      %s93 = sadd.s32 %s92, 1
      %p96 = scmp.eq.s32.totalorder %s16, 1
      %p97 = scmp.ne.s32.totalorder %s92, %s94
      %p98 = scmp.eq.s32.totalorder %s16, 0
      %p99 = por %p97, %p98
      %p100 = scmp.ne.s32.totalorder %s92, %s94
      %p101 = scmp.eq.s32.totalorder %s21, 1
      %p102 = por %p100, %p101
      %p103 = scmp.ne.s32.totalorder %s94, %s95
      %p104 = scmp.eq.s32.totalorder %s21, 0
      %p105 = por %p103, %p104
      %p106 = scmp.ne.s32.totalorder %s94, %s95
      %p107 = scmp.eq.s32.totalorder %s22, 1
      %p108 = por %p106, %p107
      %p110 = scmp.ne.s32.totalorder %s95, %s109
      %p111 = scmp.eq.s32.totalorder %s22, 0
      %p112 = por %p110, %p111
      %s113 = ssub.s32 %s16, %s23
      %p114 = scmp.eq.s32.totalorder %s113, 0
      %s116 = sadd.s32 %s115, 1
      %s117 = scalar_select %p114, %s115, %s116
      %p120 = pneg %p114
      %p121 = scmp.eq.s32.totalorder %s16, 1
      %p122 = por %p120, %p121
      %p123 = scmp.ne.s32.totalorder %s115, %s118
      %p124 = scmp.eq.s32.totalorder %s16, 0
      %p125 = por %p123, %p124
      %p126 = scmp.ne.s32.totalorder %s115, %s118
      %p127 = scmp.eq.s32.totalorder %s21, 1
      %p128 = por %p126, %p127
      %p129 = scmp.ne.s32.totalorder %s118, %s119
      %p130 = scmp.eq.s32.totalorder %s21, 0
      %p131 = por %p129, %p130
      %p132 = scmp.ne.s32.totalorder %s118, %s119
      %p133 = scmp.eq.s32.totalorder %s22, 1
      %p134 = por %p132, %p133
      %p136 = scmp.ne.s32.totalorder %s119, %s135
      %p137 = scmp.eq.s32.totalorder %s22, 0
      %p138 = por %p136, %p137
      %p139 = scmp.le.s32.totalorder 1, %s16
      %p140 = scmp.lt.s32.totalorder %s16, 3
      %p141 = pnand %p139, %p140
      %p142 = pneg %p141
      // Predicated region
      $region9: #{tpu_custom_call.1} parent=5 // pred_check
        _
      $region10: #{tpu_custom_call.1} parent=5 // pred_check_branch
        %144 = sbr.rel (%p141) target = $region12
      $region11: #{tpu_custom_call.1} parent=5 // pred_region
        %s145 = ssub.s32 %s16, 1
        // Predicated region
        $region13: #{tpu_custom_call.1} parent=11 // pred_check
          %p146 = pneg %p63
        $region14: #{tpu_custom_call.1} parent=11 // pred_check_branch
          %148 = sbr.rel (%p146) target = $region16
        $region15: #{tpu_custom_call.1} parent=11 // pred_region
          _
        $region16: #{tpu_custom_call.1} parent=11 // pred_fallthru
          _
        // Predicated region
        $region17: #{tpu_custom_call.1} parent=11 // pred_check
          %p149 = pneg %p84
        $region18: #{tpu_custom_call.1} parent=11 // pred_check_branch
          %151 = sbr.rel (%p149) target = $region20
        $region19: #{tpu_custom_call.1} parent=11 // pred_region
          _
        $region20: #{tpu_custom_call.1} parent=11 // pred_fallthru
          _
        // Predicated region
        $region21: #{tpu_custom_call.1} parent=11 // pred_check
          %p152 = pneg %p105
        $region22: #{tpu_custom_call.1} parent=11 // pred_check_branch
          %154 = sbr.rel (%p152) target = $region24
        $region23: #{tpu_custom_call.1} parent=11 // pred_region
          _
        $region24: #{tpu_custom_call.1} parent=11 // pred_fallthru
          _
      $region12: #{tpu_custom_call.1} parent=5 // pred_fallthru
        _
      %p155 = scmp.lt.s32.totalorder %s16, 2
      // Predicated region
      $region25: #{tpu_custom_call.1} parent=5 // pred_check
        %p156 = pneg %p155
      $region26: #{tpu_custom_call.1} parent=5 // pred_check_branch
        %158 = sbr.rel (%p156) target = $region28
      $region27: #{tpu_custom_call.1} parent=5 // pred_region
        // Predicated region
        $region29: #{tpu_custom_call.1} parent=27 // pred_check
          %p159 = pneg %p36
        $region30: #{tpu_custom_call.1} parent=27 // pred_check_branch
          %161 = sbr.rel (%p159) target = $region32
        $region31: #{tpu_custom_call.1} parent=27 // pred_region
          %s162 = sand.u32 %s26, 1
          %s163 = scalar_lea.sflag [#allocation3], %s162
          %s164 = sand.u32 %s26, 1
          %s165 = smul.addr %s164, 8
          %s166 = scalar_lea.vmem [#allocation2], %s165
          %168 = vsyncadd %s163, 0
          %s169 = smul.addr %s16, 8
          %s170 = scalar_lea.hbm %s0, %s169
          %s172 = sshll.u32 %s170, 4
          %s173 = int_to_ptr.hbm [resolvable:$true] %s172
          %s174 = sshll.u32 %s166, 4
          %s175 = int_to_ptr.vmem [resolvable:$true] %s174
          %177 = dma.hbm_to_vmem [thread:$0]  %s173, 128, %s175, %s163
        $region32: #{tpu_custom_call.1} parent=27 // pred_fallthru
          _
      $region28: #{tpu_custom_call.1} parent=5 // pred_fallthru
        _
      %p178 = scmp.le.s32.totalorder 1, %s16
      %p179 = scmp.lt.s32.totalorder %s16, 3
      %p180 = pnand %p178, %p179
      %p181 = pneg %p180
      // Predicated region
      $region33: #{tpu_custom_call.1} parent=5 // pred_check
        _
      $region34: #{tpu_custom_call.1} parent=5 // pred_check_branch
        %183 = sbr.rel (%p180) target = $region36
      $region35: #{tpu_custom_call.1} parent=5 // pred_region
        %s184 = ssub.s32 %s16, 1
        %s185 = sand.u32 %s29, 1
        %s186 = scalar_lea.sflag [#allocation3], %s185
        %s187 = sand.u32 %s29, 1
        %s188 = smul.addr %s187, 8
        %s189 = scalar_lea.vmem [#allocation2], %s188
        // Predicated region
        $region37: #{tpu_custom_call.1} parent=35 // pred_check
          %p190 = pneg %p42
        $region38: #{tpu_custom_call.1} parent=35 // pred_check_branch
          %192 = sbr.rel (%p190) target = $region40
        $region39: #{tpu_custom_call.1} parent=35 // pred_region
          %194 = dma.done %s186, 128
        $region40: #{tpu_custom_call.1} parent=35 // pred_fallthru
          _
        %s195 = sand.u32 %s29, 1
        %s196 = scalar_lea.sflag [#allocation3], %s195
        %s197 = sand.u32 %s29, 1
        %s198 = smul.addr %s197, 8
        %s199 = scalar_lea.vmem [#allocation2], %s198
        %p200 = pneg %p42
        %p201 = pneg %p39
        %p202 = pneg %p63
        %p203 = pneg %p60
        %p204 = pneg %p84
        %p205 = pneg %p81
        %p206 = pneg %p105
        %p207 = pneg %p102
        %p208 = pneg %p131
        %p209 = pneg %p128
        %s210 = sand.u32 %s118, 1
        %s211 = scalar_lea.sflag [#allocation4], %s210
        %s212 = sand.u32 %s118, 1
        %s213 = scalar_lea.vmem [#allocation5], %s212
        %v214 = vld [vmem:[%s189] sm:$0xff]
        %v215 = vld [vmem:[%s1] sm:$0xff]
        %v216 = vld [vmem:[%s1 + $0x8] sm:$0xff]
        %v217 = vld [vmem:[%s1 + $0x10] sm:$0xff]
        %v218 = vld [vmem:[%s1 + $0x18] sm:$0xff]
        %v219 = vld [vmem:[%s1 + $0x20] sm:$0x3f]
        %v220 = vld [vmem:[%s3] sm:$0x1]
        %v221 = vperm.slane %v220, 0
        %vm222 = vcmask 310272
        %v224 = vsel %vm222, %v214, 0
        %vm226 = vcmask 1045504
        %v228 = vsel %vm226, %v219, 0
        %230 = vmatpush.msra.mxu0 0.0
        %231 = vmatpush.msra.mxu0 0.0
        %232 = vmatpush.msra.mxu0 0.0
        %233 = vmatpush.msra.mxu0 0.0
        %234 = vmatpush.msra.mxu0 0.0
        %235 = vmatpush.msra.mxu0 0.0
        %236 = vmatpush.msra.mxu0 0.0
        %237 = vmatpush.msra.mxu0 0.0
        %238 = vmatpush.msra.mxu0 0.0
        %239 = vmatpush.msra.mxu0 0.0
        %240 = vmatpush.msra.mxu0 0.0
        %241 = vmatpush.msra.mxu0 %v228
        %242 = vmatpush.msra.mxu0 %v218
        %243 = vmatpush.msra.mxu0 %v217
        %244 = vmatpush.msra.mxu0 %v216
        %245 = vmatpush.msra.mxu0 %v215
        %246 = vmatmul.f32.gmra.mxu0 %v224
        %v247 = vpop.f32.mrf.mxu0
        %v248 = vadd.f32 %v221, %v247
        %249 = vdwg.mxu0
        %v250 = vxor.u32 %v248, 2147483648
        %v251 = vmul.f32 %v250, 1.442695
        %v252 = vpow.pop %v251
        %v253 = vadd.f32 %v252, 1.0
        %v254 = vrcp.pop %v253
        %v255 = vmul.f32 %v253, %v254
        %v256 = vsub.f32 1.0, %v255
        %v257 = vmul.f32 %v254, %v256
        %v258 = vadd.f32 %v254, %v257
        %vm259 = vweird.f32 %v253
        %vm260 = vweird.f32 %v254
        %vm261 = vmor %vm259, %vm260
        %v262 = vsel %vm261, %v254, %v258
        %v263 = vand.u32 2147483647, %v253
        %vm264 = vcmp.eq.f32.partialorder %v263, 8.507059e+37
        %v265 = vand.u32 %v253, 2147483648
        %v266 = vor.u32 1.1754944e-38, %v265
        %v267 = vsel %vm264, %v266, %v262
        %v268 = vmul.f32 1.0, %v267
        %v269 = vmul.f32 %v248, %v268
        %v270 = vld [vmem:[%s2] sm:$0xff]
        %v271 = vld [vmem:[%s2 + $0x10] sm:$0xff]
        %v272 = vld [vmem:[%s2 + $0x20] sm:$0xff]
        %v273 = vld [vmem:[%s2 + $0x30] sm:$0xff]
        %vm274 = vcmask 261120
        %v276 = vsel %vm274, %v269, 0
        %278 = vmatpush.msra.mxu0 0.0
        %279 = vmatpush.msra.mxu0 0.0
        %280 = vmatpush.msra.mxu0 0.0
        %281 = vmatpush.msra.mxu0 0.0
        %282 = vmatpush.msra.mxu0 0.0
        %283 = vmatpush.msra.mxu0 0.0
        %284 = vmatpush.msra.mxu0 0.0
        %285 = vmatpush.msra.mxu0 0.0
        %286 = vmatpush.msra.mxu0 0.0
        %287 = vmatpush.msra.mxu0 0.0
        %288 = vmatpush.msra.mxu0 0.0
        %289 = vmatpush.msra.mxu0 0.0
        %290 = vmatpush.msra.mxu0 %v273
        %291 = vmatpush.msra.mxu0 %v272
        %292 = vmatpush.msra.mxu0 %v271
        %293 = vmatpush.msra.mxu0 %v270
        %294 = vmatmul.f32.gmra.mxu0 %v276
        %v295 = vpop.f32.mrf.mxu0
        %v296 = vadd.f32 0.0, %v295
        %297 = vdwg.mxu0
        %299 = vrot.lane.b32.xlu0 %v296, 96
        %v300 = vpop.permute.xlu0 %299
        %v301 = vsel %vm274, %v296, 0
        %v303 = vsel %vm274, %v300, 0
        %305 = vmatpush.xpose.msra.mxu0 0.0
        %306 = vmatpush.xpose.msra.mxu0 0.0
        %307 = vmatpush.xpose.msra.mxu0 0.0
        %308 = vmatpush.xpose.msra.mxu0 0.0
        %309 = vmatpush.xpose.msra.mxu0 0.0
        %310 = vmatpush.xpose.msra.mxu0 0.0
        %311 = vmatpush.xpose.msra.mxu0 0.0
        %312 = vmatpush.xpose.msra.mxu0 0.0
        %313 = vmatpush.xpose.msra.mxu0 0.0
        %314 = vmatpush.xpose.msra.mxu0 0.0
        %315 = vmatpush.xpose.msra.mxu0 0.0
        %316 = vmatpush.xpose.msra.mxu0 0.0
        %317 = vmatpush.xpose.msra.mxu0 0.0
        %318 = vmatpush.xpose.msra.mxu0 0.0
        %319 = vmatpush.xpose.msra.mxu0 0.0
        %320 = vmatpush.xpose.msra.mxu0 %v303
        %321 = vmatmul.f32.gmra.mxu0 %v301
        %v322 = vpop.f32.mrf.mxu0
        %v323 = vadd.f32 0.0, %v322
        %324 = vdwg.mxu0
        %v325 = vmul.f32 %v323, 0.17677669
        %vm326 = vcmask 64512
        %v327 = vsel %vm326, %v325, -inf
        %328 = vmax.xlane.f32.xlu0 %v327
        %v329 = vpop.xlane.xlu0 %328
        %v330 = vsub.f32 %v325, %v329
        %v331 = vmul.f32 %v330, 1.442695
        %v332 = vpow.pop %v331
        %v333 = vsel %vm326, %v332, 0.0
        %334 = vadd.xlane.f32.xlu0 %v333
        %v335 = vpop.xlane.xlu0 %334
        %336 = vrot.lane.b32.xlu0 %v296, 64
        %v337 = vpop.permute.xlu0 %336
        %v340 = vsel %vm326, %v332, 0
        %342 = vmatpush.msra.mxu0 0.0
        %343 = vmatpush.msra.mxu0 0.0
        %344 = vmatpush.msra.mxu0 0.0
        %345 = vmatpush.msra.mxu0 0.0
        %346 = vmatpush.msra.mxu0 0.0
        %347 = vmatpush.msra.mxu0 0.0
        %348 = vmatpush.msra.mxu0 0.0
        %349 = vmatpush.msra.mxu0 0.0
        %350 = vmatpush.msra.mxu0 0.0
        %351 = vmatpush.msra.mxu0 0.0
        %352 = vmatpush.msra.mxu0 0.0
        %353 = vmatpush.msra.mxu0 0.0
        %354 = vmatpush.msra.mxu0 0.0
        %355 = vmatpush.msra.mxu0 0.0
        %356 = vmatpush.msra.mxu0 0.0
        %357 = vmatpush.msra.mxu0 %v337
        %358 = vmatmul.f32.gmra.mxu0 %v340
        %v359 = vpop.f32.mrf.mxu0
        %v360 = vadd.f32 0.0, %v359
        %361 = vdwg.mxu0
        %v362 = vrcp.pop %v335
        %v363 = vmul.f32 %v335, %v362
        %v364 = vsub.f32 1.0, %v363
        %v365 = vmul.f32 %v362, %v364
        %v366 = vadd.f32 %v362, %v365
        %vm367 = vweird.f32 %v335
        %vm368 = vweird.f32 %v362
        %vm369 = vmor %vm367, %vm368
        %v370 = vsel %vm369, %v362, %v366
        %v371 = vand.u32 2147483647, %v335
        %vm372 = vcmp.eq.f32.partialorder %v371, 8.507059e+37
        %v373 = vand.u32 %v335, 2147483648
        %v374 = vor.u32 1.1754944e-38, %v373
        %v375 = vsel %vm372, %v374, %v370
        %v376 = vmul.f32 1.0, %v375
        %v377 = vmul.f32 %v360, %v376
        %v378 = vadd.f32 %v269, %v377
        %v379 = vsel %vm274, %v378, 0.0
        %v380 = vrot.slane %v379, 4
        %v381 = vadd.f32 %v379, %v380
        %v382 = vrot.slane %v381, 2
        %v383 = vadd.f32 %v381, %v382
        %v384 = vrot.slane %v383, 1
        %v385 = vadd.f32 %v383, %v384
        %v386 = vrcp.pop 8.0
        %v387 = vmul.f32 8.0, %v386
        %v388 = vsub.f32 1.0, %v387
        %v389 = vmul.f32 %v386, %v388
        %v390 = vadd.f32 %v386, %v389
        %vm391 = vweird.f32 %v386
        %v392 = vsel %vm391, %v386, %v390
        %v393 = vmul.f32 %v385, %v392
        %v394 = vld [vmem:[%s3 + $0x1] sm:$0x1]
        %399 = vrot.lane.b32.xlu0 %v270, 32
        %v400 = vpop.permute.xlu0 %399
        %401 = vrot.lane.b32.xlu0 %v271, 32
        %v402 = vpop.permute.xlu0 %401
        %403 = vrot.lane.b32.xlu0 %v272, 32
        %v404 = vpop.permute.xlu0 %403
        %405 = vrot.lane.b32.xlu0 %v273, 32
        %v406 = vpop.permute.xlu0 %405
        %v412 = vsel %vm274, %v393, 0
        %414 = vmatpush.msra.mxu0 0.0
        %415 = vmatpush.msra.mxu0 0.0
        %416 = vmatpush.msra.mxu0 0.0
        %417 = vmatpush.msra.mxu0 0.0
        %418 = vmatpush.msra.mxu0 0.0
        %419 = vmatpush.msra.mxu0 0.0
        %420 = vmatpush.msra.mxu0 0.0
        %421 = vmatpush.msra.mxu0 0.0
        %422 = vmatpush.msra.mxu0 0.0
        %423 = vmatpush.msra.mxu0 0.0
        %424 = vmatpush.msra.mxu0 0.0
        %425 = vmatpush.msra.mxu0 0.0
        %426 = vmatpush.msra.mxu0 %v406
        %427 = vmatpush.msra.mxu0 %v404
        %428 = vmatpush.msra.mxu0 %v402
        %429 = vmatpush.msra.mxu0 %v400
        %430 = vmatmul.f32.gmra.mxu0 %v412
        %v431 = vpop.f32.mrf.mxu0
        %v432 = vadd.f32 %v394, %v431
        %433 = vdwg.mxu0
        %v434 = vxor.u32 %v432, 2147483648
        %v435 = vmul.f32 %v434, 1.442695
        %v436 = vpow.pop %v435
        %v437 = vadd.f32 %v436, 1.0
        %v438 = vrcp.pop %v437
        %v439 = vmul.f32 %v437, %v438
        %v440 = vsub.f32 1.0, %v439
        %v441 = vmul.f32 %v438, %v440
        %v442 = vadd.f32 %v438, %v441
        %vm443 = vweird.f32 %v437
        %vm444 = vweird.f32 %v438
        %vm445 = vmor %vm443, %vm444
        %v446 = vsel %vm445, %v438, %v442
        %v447 = vand.u32 2147483647, %v437
        %vm448 = vcmp.eq.f32.partialorder %v447, 8.507059e+37
        %v449 = vand.u32 %v437, 2147483648
        %v450 = vor.u32 1.1754944e-38, %v449
        %v451 = vsel %vm448, %v450, %v446
        %v452 = vmul.f32 1.0, %v451
        %v453 = vmul.f32 %v432, %v452
        %v454 = vld [vmem:[%s2 + $0x8] sm:$0xff]
        %v455 = vld [vmem:[%s2 + $0x18] sm:$0xff]
        %v456 = vld [vmem:[%s2 + $0x28] sm:$0xff]
        %v457 = vld [vmem:[%s2 + $0x38] sm:$0xff]
        %v458 = vld [vmem:[%s3 + $0x2] sm:$0x1]
        %v460 = vsel %vm274, %v453, 0
        %462 = vmatpush.msra.mxu0 0.0
        %463 = vmatpush.msra.mxu0 0.0
        %464 = vmatpush.msra.mxu0 0.0
        %465 = vmatpush.msra.mxu0 0.0
        %466 = vmatpush.msra.mxu0 0.0
        %467 = vmatpush.msra.mxu0 0.0
        %468 = vmatpush.msra.mxu0 0.0
        %469 = vmatpush.msra.mxu0 0.0
        %470 = vmatpush.msra.mxu0 0.0
        %471 = vmatpush.msra.mxu0 0.0
        %472 = vmatpush.msra.mxu0 0.0
        %473 = vmatpush.msra.mxu0 0.0
        %474 = vmatpush.msra.mxu0 %v457
        %475 = vmatpush.msra.mxu0 %v456
        %476 = vmatpush.msra.mxu0 %v455
        %477 = vmatpush.msra.mxu0 %v454
        %478 = vmatmul.f32.gmra.mxu0 %v460
        %v479 = vpop.f32.mrf.mxu0
        %v480 = vadd.f32 %v458, %v479
        %481 = vdwg.mxu0
        %vm482 = vcmask 24576
        %483 = vst.msk [vmem:[%s213] sm:$0x1] %vm482, %v480
        %s484 = sand.u32 %s118, 1
        %s485 = scalar_lea.sflag [#allocation4], %s484
        %s486 = sand.u32 %s118, 1
        %s487 = scalar_lea.vmem [#allocation5], %s486
        // Predicated region
        $region41: #{tpu_custom_call.1} parent=35 // pred_check
          %p488 = pneg %p128
        $region42: #{tpu_custom_call.1} parent=35 // pred_check_branch
          %490 = sbr.rel (%p488) target = $region44
        $region43: #{tpu_custom_call.1} parent=35 // pred_region
          %492 = vsyncadd %s485, 0
          %s493 = scalar_lea.hbm %s4, %s21
          %s495 = sshll.u32 %s487, 4
          %s496 = int_to_ptr.vmem [resolvable:$true] %s495
          %s497 = sshll.u32 %s493, 4
          %s498 = int_to_ptr.hbm [resolvable:$true] %s497
          %500 = dma.vmem_to_hbm [thread:$0]  %s496, 16, %s498, %s485
        $region44: #{tpu_custom_call.1} parent=35 // pred_fallthru
          _
      $region36: #{tpu_custom_call.1} parent=5 // pred_fallthru
        _
      %p501 = scmp.le.s32.totalorder 2, %s16
      // Predicated region
      $region45: #{tpu_custom_call.1} parent=5 // pred_check
        %p502 = pneg %p501
      $region46: #{tpu_custom_call.1} parent=5 // pred_check_branch
        %504 = sbr.rel (%p502) target = $region48
      $region47: #{tpu_custom_call.1} parent=5 // pred_region
        %s505 = ssub.s32 %s16, 2
        // Predicated region
        $region49: #{tpu_custom_call.1} parent=47 // pred_check
          %p506 = pneg %p134
        $region50: #{tpu_custom_call.1} parent=47 // pred_check_branch
          %508 = sbr.rel (%p506) target = $region52
        $region51: #{tpu_custom_call.1} parent=47 // pred_region
          %s509 = sand.u32 %s119, 1
          %s510 = scalar_lea.sflag [#allocation4], %s509
          %s511 = sand.u32 %s119, 1
          %s512 = scalar_lea.vmem [#allocation5], %s511
          %514 = dma.done %s510, 16
        $region52: #{tpu_custom_call.1} parent=47 // pred_fallthru
          _
      $region48: #{tpu_custom_call.1} parent=5 // pred_fallthru
        _
    $region6: #{tpu_custom_call.1} parent=1 // loop_footer
      %s20 = sadd.s32 1, %s16
    $region7: #{tpu_custom_call.1} parent=1 // loop_footer_branch
      %15 = sbr.rel target = $region3
    $region8: #{tpu_custom_call.1} parent=1 // loop_exit
      _
    %515 = vsyncpa [#allocation3], 1
    %s516 = scalar_lea.sflag [#allocation3], 1
    %517 = vsyncpa %s516, 1
    %518 = vsyncpa [#allocation4], 1
    %s519 = scalar_lea.sflag [#allocation4], 1
    %520 = vsyncpa %s519, 1

</llo_original>
